<compile_context>
chip_gen: v7x
topology: tpu7x:2x2x1
jax: 0.10.0
libtpu: 0.0.40
codegen_flags: <defaults>
</compile_context>

<pallas_src>
import functools

import jax
import jax.numpy as jnp
from jax.experimental import pallas as pl
from jax.experimental.pallas import tpu as pltpu

IN_DIM = 52 + 52 + 52 * 3 + 52   # = 312
H1 = 256
H2 = 128


def _round_up(n, m):
    return ((n + m - 1) // m) * m


def _mix32(v):
    """xorshift-multiply integer hash (splitmix-style), uint32 in / uint32 out."""
    v = v ^ (v >> jnp.uint32(16))
    v = v * jnp.uint32(0x7FEB352D)
    v = v ^ (v >> jnp.uint32(15))
    v = v * jnp.uint32(0x846CA68B)
    v = v ^ (v >> jnp.uint32(16))
    return v


def _mlp_kernel(seed_ref, x_ref,
                w1_ref, b1_ref, w2_ref, b2_ref,
                w3_ref, b3_ref, w4_ref, b4_ref,
                w5_ref, b5_ref, out_ref, *, training):
    """Full Bigtwo312f forward for one (TILE_B, 312) batch tile."""

    if training:
        # Per-call seed combined with the grid step so every batch tile gets an
        # independent dropout mask.
        base = (seed_ref[0].astype(jnp.uint32) * jnp.uint32(0x9E3779B9)
                + pl.program_id(0).astype(jnp.uint32) * jnp.uint32(0x85EBCA6B))

    def dropout(y, layer_salt):
        # nn.Dropout(p=0.5): keep each element w.p. 0.5, scale kept by 2.
        rows = jax.lax.broadcasted_iota(jnp.int32, y.shape, 0).astype(jnp.uint32)
        cols = jax.lax.broadcasted_iota(jnp.int32, y.shape, 1).astype(jnp.uint32)
        ctr = (base
               + jnp.uint32(layer_salt) * jnp.uint32(0xC2B2AE35)
               + rows * jnp.uint32(y.shape[1]) + cols)
        bits = _mix32(ctr)
        keep = (bits & jnp.uint32(0x10000)) != jnp.uint32(0)
        return jnp.where(keep, y * jnp.float32(2.0), jnp.float32(0.0))

    def dense(a, w_ref, b_ref):
        # bf16 operands on the MXU, f32 accumulation, f32 bias add.
        return (jnp.dot(a.astype(jnp.bfloat16), w_ref[...],
                        preferred_element_type=jnp.float32)
                + b_ref[...])

    x = x_ref[...]

    # dense1 + relu (+ dropout)
    y = jnp.maximum(dense(x, w1_ref, b1_ref), 0.0)
    if training:
        y = dropout(y, 1)

    # dense2 + relu (+ dropout)
    y = jnp.maximum(dense(y, w2_ref, b2_ref), 0.0)
    if training:
        y = dropout(y, 2)

    residual = y

    # dense3 + relu (+ dropout)
    y = jnp.maximum(dense(y, w3_ref, b3_ref), 0.0)
    if training:
        y = dropout(y, 3)

    # dense4 + relu (+ dropout)
    y = jnp.maximum(dense(y, w4_ref, b4_ref), 0.0)
    if training:
        y = dropout(y, 4)

    # residual add, then dense5 as VPU multiply + lane reduction (avoids an
    # N=1 MXU matmul on the critical tail).
    y = y + residual
    y = jnp.sum(y * w5_ref[...], axis=-1, keepdims=True) + b5_ref[...]

    out_ref[...] = y.astype(out_ref.dtype)


def init_params(key):
    """Deterministic init mimicking nn.Linear's U(-1/sqrt(fan_in), ...) scheme.

    Weights are returned already transposed to (in_features, out_features)."""
    sizes = [(IN_DIM, H1), (H1, H2), (H2, H2), (H2, H2), (H2, 1)]
    params = []
    for (fan_in, fan_out) in sizes:
        key, kw, kb = jax.random.split(key, 3)
        bound = 1.0 / jnp.sqrt(float(fan_in))
        w = jax.random.uniform(kw, (fan_in, fan_out), jnp.float32, -bound, bound)
        b = jax.random.uniform(kb, (fan_out,), jnp.float32, -bound, bound)
        params.extend([w, b])
    return tuple(params)


def bigtwo312f_forward(x, params, *, training=True, seed=0, tile_b=512):
    B = x.shape[0]
    w1, b1, w2, b2, w3, b3, w4, b4, w5, b5 = params

    tb = min(tile_b, _round_up(B, 8))        # big tile, still >= (8,·) aligned
    num_tiles = pl.cdiv(B, tb)

    seed_arr = jnp.asarray([seed], dtype=jnp.int32)

    # Activation stream is tiled over batch; weights/biases use constant
    # index_maps so they are fetched once and stay resident in VMEM.
    def xmap(i, s):
        return (i, 0)

    def cmap(i, s):
        return (0, 0)

    grid_spec = pltpu.PrefetchScalarGridSpec(
        num_scalar_prefetch=1,
        grid=(num_tiles,),
        in_specs=[
            pl.BlockSpec((tb, IN_DIM), xmap),      # x
            pl.BlockSpec((IN_DIM, H1), cmap),      # w1 (bf16)
            pl.BlockSpec((1, H1), cmap),           # b1
            pl.BlockSpec((H1, H2), cmap),          # w2 (bf16)
            pl.BlockSpec((1, H2), cmap),           # b2
            pl.BlockSpec((H2, H2), cmap),          # w3 (bf16)
            pl.BlockSpec((1, H2), cmap),           # b3
            pl.BlockSpec((H2, H2), cmap),          # w4 (bf16)
            pl.BlockSpec((1, H2), cmap),           # b4
            pl.BlockSpec((1, H2), cmap),           # w5 as (1,128) row, f32
            pl.BlockSpec((1, 1), cmap),            # b5
        ],
        out_specs=pl.BlockSpec((tb, 1), xmap),
    )

    flops = 2 * B * (IN_DIM * H1 + H1 * H2 + 2 * H2 * H2 + H2)
    param_bytes = 2 * (IN_DIM * H1 + H1 * H2 + 2 * H2 * H2) + 4 * (H1 + 4 * H2 + 1)
    cost = pl.CostEstimate(
        flops=flops,
        transcendentals=0,
        bytes_accessed=B * (IN_DIM * x.dtype.itemsize + 4) + param_bytes,
    )

    kernel = functools.partial(_mlp_kernel, training=training)

    return pl.pallas_call(
        kernel,
        out_shape=jax.ShapeDtypeStruct((B, 1), jnp.float32),
        grid_spec=grid_spec,
        compiler_params=pltpu.CompilerParams(
            dimension_semantics=("parallel",)),
        cost_estimate=cost,
    )(seed_arr, x,
      w1.astype(jnp.bfloat16), b1.reshape(1, -1),
      w2.astype(jnp.bfloat16), b2.reshape(1, -1),
      w3.astype(jnp.bfloat16), b3.reshape(1, -1),
      w4.astype(jnp.bfloat16), b4.reshape(1, -1),
      w5.reshape(1, -1), b5.reshape(1, 1))


def _reference_eval(x, params):
    """Plain-JAX reference for the training=False path (dropout disabled).

    Mirrors the kernel's bf16-operand / f32-accumulate matmuls."""
    w1, b1, w2, b2, w3, b3, w4, b4, w5, b5 = params

    def dense(a, w, b):
        return jnp.dot(a.astype(jnp.bfloat16), w.astype(jnp.bfloat16),
                       preferred_element_type=jnp.float32) + b

    y = jax.nn.relu(dense(x, w1, b1))
    y = jax.nn.relu(dense(y, w2, b2))
    res = y
    y = jax.nn.relu(dense(y, w3, b3))
    y = jax.nn.relu(dense(y, w4, b4))
    y = y + res
    return y @ w5 + b5


if __name__ == "__main__":
    key = jax.random.PRNGKey(0)
    kx, kp = jax.random.split(key)

    B = 8
    x = jax.random.normal(kx, (B, IN_DIM), jnp.float32)
    params = init_params(kp)

    # Eval-mode run (deterministic) — check against pure-JAX reference.
    out_eval = jax.block_until_ready(bigtwo312f_forward(x, params, training=False))
    ref = _reference_eval(x, params)
    assert out_eval.shape == (B, 1)
    assert jnp.allclose(out_eval, ref, atol=2e-2, rtol=2e-2), (
        float(jnp.max(jnp.abs(out_eval - ref))))

    # Training-mode run (in-kernel counter-hash dropout, p=0.5).
    out_train = jax.block_until_ready(
        bigtwo312f_forward(x, params, training=True, seed=1234))
    assert out_train.shape == (B, 1)
    assert bool(jnp.all(jnp.isfinite(out_train)))

    print("KERNEL_OK")
</pallas_src>

<mosaic_0001>
module attributes {stable_mosaic.version = 11 : i64} {
  func.func @_mlp_kernel(%arg0: i32, %arg1: memref<1xi32, #tpu.memory_space<smem>>, %arg2: memref<8x312xf32, #tpu.memory_space<vmem>>, %arg3: memref<312x256xbf16, #tpu.memory_space<vmem>>, %arg4: memref<1x256xf32, #tpu.memory_space<vmem>>, %arg5: memref<256x128xbf16, #tpu.memory_space<vmem>>, %arg6: memref<1x128xf32, #tpu.memory_space<vmem>>, %arg7: memref<128x128xbf16, #tpu.memory_space<vmem>>, %arg8: memref<1x128xf32, #tpu.memory_space<vmem>>, %arg9: memref<128x128xbf16, #tpu.memory_space<vmem>>, %arg10: memref<1x128xf32, #tpu.memory_space<vmem>>, %arg11: memref<1x128xf32, #tpu.memory_space<vmem>>, %arg12: memref<1x1xf32, #tpu.memory_space<vmem>>, %arg13: memref<8x1xf32, #tpu.memory_space<vmem>>) attributes {dimension_semantics = [#tpu.dimension_semantics<parallel>], iteration_bounds = array<i64: 1>, scalar_prefetch = 1 : i64, scratch_operands = 0 : i64, tpu.core_type = #tpu.core_type<tc>, window_params = [{transform_indices = @transform_0, window_bounds = array<i64: 8, 312>}, {pipeline_mode = #tpu.pipeline_mode<synchronous>, transform_indices = @transform_1, window_bounds = array<i64: 312, 256>}, {pipeline_mode = #tpu.pipeline_mode<synchronous>, transform_indices = @transform_2, window_bounds = array<i64: 1, 256>}, {pipeline_mode = #tpu.pipeline_mode<synchronous>, transform_indices = @transform_3, window_bounds = array<i64: 256, 128>}, {pipeline_mode = #tpu.pipeline_mode<synchronous>, transform_indices = @transform_4, window_bounds = array<i64: 1, 128>}, {pipeline_mode = #tpu.pipeline_mode<synchronous>, transform_indices = @transform_5, window_bounds = array<i64: 128, 128>}, {pipeline_mode = #tpu.pipeline_mode<synchronous>, transform_indices = @transform_6, window_bounds = array<i64: 1, 128>}, {pipeline_mode = #tpu.pipeline_mode<synchronous>, transform_indices = @transform_7, window_bounds = array<i64: 128, 128>}, {pipeline_mode = #tpu.pipeline_mode<synchronous>, transform_indices = @transform_8, window_bounds = array<i64: 1, 128>}, {pipeline_mode = #tpu.pipeline_mode<synchronous>, transform_indices = @transform_9, window_bounds = array<i64: 1, 128>}, {pipeline_mode = #tpu.pipeline_mode<synchronous>, transform_indices = @transform_10, window_bounds = array<i64: 1, 1>}, {transform_indices = @transform_11, window_bounds = array<i64: 8, 1>}]} {
    %c0 = arith.constant 0 : index
    %c0_0 = arith.constant 0 : index
    %0 = vector.load %arg2[%c0, %c0_0] : memref<8x312xf32, #tpu.memory_space<vmem>>, vector<8x312xf32>
    %1 = arith.truncf %0 : vector<8x312xf32> to vector<8x312xbf16>
    %c0_1 = arith.constant 0 : index
    %c0_2 = arith.constant 0 : index
    %2 = vector.load %arg3[%c0_1, %c0_2] : memref<312x256xbf16, #tpu.memory_space<vmem>>, vector<312x256xbf16>
    %cst = arith.constant dense<0.000000e+00> : vector<8x256xf32>
    %3 = tpu.matmul %1, %2, %cst {dimension_numbers = #tpu.dot_dimension_numbers<[1], [0], [0], [1], [0, 0, 1, 1], [], []>} : vector<8x312xbf16>, vector<312x256xbf16>, vector<8x256xf32> -> vector<8x256xf32>
    %c0_3 = arith.constant 0 : index
    %c0_4 = arith.constant 0 : index
    %4 = vector.load %arg4[%c0_3, %c0_4] : memref<1x256xf32, #tpu.memory_space<vmem>>, vector<1x256xf32>
    %5 = vector.broadcast %4 : vector<1x256xf32> to vector<8x256xf32>
    %6 = arith.addf %3, %5 : vector<8x256xf32>
    %cst_5 = arith.constant 0.000000e+00 : f32
    %7 = vector.broadcast %cst_5 : f32 to vector<8x256xf32>
    %8 = arith.maximumf %6, %7 : vector<8x256xf32>
    %9 = arith.truncf %8 : vector<8x256xf32> to vector<8x256xbf16>
    %c0_6 = arith.constant 0 : index
    %c0_7 = arith.constant 0 : index
    %10 = vector.load %arg5[%c0_6, %c0_7] : memref<256x128xbf16, #tpu.memory_space<vmem>>, vector<256x128xbf16>
    %cst_8 = arith.constant dense<0.000000e+00> : vector<8x128xf32>
    %11 = tpu.matmul %9, %10, %cst_8 {dimension_numbers = #tpu.dot_dimension_numbers<[1], [0], [0], [1], [0, 0, 1, 1], [], []>} : vector<8x256xbf16>, vector<256x128xbf16>, vector<8x128xf32> -> vector<8x128xf32>
    %c0_9 = arith.constant 0 : index
    %c0_10 = arith.constant 0 : index
    %12 = vector.load %arg6[%c0_9, %c0_10] : memref<1x128xf32, #tpu.memory_space<vmem>>, vector<1x128xf32>
    %13 = vector.broadcast %12 : vector<1x128xf32> to vector<8x128xf32>
    %14 = arith.addf %11, %13 : vector<8x128xf32>
    %cst_11 = arith.constant 0.000000e+00 : f32
    %15 = vector.broadcast %cst_11 : f32 to vector<8x128xf32>
    %16 = arith.maximumf %14, %15 : vector<8x128xf32>
    %17 = arith.truncf %16 : vector<8x128xf32> to vector<8x128xbf16>
    %c0_12 = arith.constant 0 : index
    %c0_13 = arith.constant 0 : index
    %18 = vector.load %arg7[%c0_12, %c0_13] : memref<128x128xbf16, #tpu.memory_space<vmem>>, vector<128x128xbf16>
    %cst_14 = arith.constant dense<0.000000e+00> : vector<8x128xf32>
    %19 = tpu.matmul %17, %18, %cst_14 {dimension_numbers = #tpu.dot_dimension_numbers<[1], [0], [0], [1], [0, 0, 1, 1], [], []>} : vector<8x128xbf16>, vector<128x128xbf16>, vector<8x128xf32> -> vector<8x128xf32>
    %c0_15 = arith.constant 0 : index
    %c0_16 = arith.constant 0 : index
    %20 = vector.load %arg8[%c0_15, %c0_16] : memref<1x128xf32, #tpu.memory_space<vmem>>, vector<1x128xf32>
    %21 = vector.broadcast %20 : vector<1x128xf32> to vector<8x128xf32>
    %22 = arith.addf %19, %21 : vector<8x128xf32>
    %cst_17 = arith.constant 0.000000e+00 : f32
    %23 = vector.broadcast %cst_17 : f32 to vector<8x128xf32>
    %24 = arith.maximumf %22, %23 : vector<8x128xf32>
    %25 = arith.truncf %24 : vector<8x128xf32> to vector<8x128xbf16>
    %c0_18 = arith.constant 0 : index
    %c0_19 = arith.constant 0 : index
    %26 = vector.load %arg9[%c0_18, %c0_19] : memref<128x128xbf16, #tpu.memory_space<vmem>>, vector<128x128xbf16>
    %cst_20 = arith.constant dense<0.000000e+00> : vector<8x128xf32>
    %27 = tpu.matmul %25, %26, %cst_20 {dimension_numbers = #tpu.dot_dimension_numbers<[1], [0], [0], [1], [0, 0, 1, 1], [], []>} : vector<8x128xbf16>, vector<128x128xbf16>, vector<8x128xf32> -> vector<8x128xf32>
    %c0_21 = arith.constant 0 : index
    %c0_22 = arith.constant 0 : index
    %28 = vector.load %arg10[%c0_21, %c0_22] : memref<1x128xf32, #tpu.memory_space<vmem>>, vector<1x128xf32>
    %29 = vector.broadcast %28 : vector<1x128xf32> to vector<8x128xf32>
    %30 = arith.addf %27, %29 : vector<8x128xf32>
    %cst_23 = arith.constant 0.000000e+00 : f32
    %31 = vector.broadcast %cst_23 : f32 to vector<8x128xf32>
    %32 = arith.maximumf %30, %31 : vector<8x128xf32>
    %33 = arith.addf %32, %16 : vector<8x128xf32>
    %c0_24 = arith.constant 0 : index
    %c0_25 = arith.constant 0 : index
    %34 = vector.load %arg11[%c0_24, %c0_25] : memref<1x128xf32, #tpu.memory_space<vmem>>, vector<1x128xf32>
    %35 = vector.broadcast %34 : vector<1x128xf32> to vector<8x128xf32>
    %36 = arith.mulf %33, %35 : vector<8x128xf32>
    %cst_26 = arith.constant dense<0.000000e+00> : vector<8xf32>
    %37 = vector.multi_reduction <add>, %36, %cst_26 [1] : vector<8x128xf32> to vector<8xf32>
    %38 = vector.shape_cast %37 : vector<8xf32> to vector<8x1xf32>
    %c0_27 = arith.constant 0 : index
    %c0_28 = arith.constant 0 : index
    %39 = vector.load %arg12[%c0_27, %c0_28] : memref<1x1xf32, #tpu.memory_space<vmem>>, vector<1x1xf32>
    %40 = vector.broadcast %39 : vector<1x1xf32> to vector<8x1xf32>
    %41 = arith.addf %38, %40 : vector<8x1xf32>
    %c0_29 = arith.constant 0 : index
    %c0_30 = arith.constant 0 : index
    %42 = vector.load %arg13[%c0_29, %c0_30] : memref<8x1xf32, #tpu.memory_space<vmem>>, vector<8x1xf32>
    tpu.vector_store %arg13[%c0_29, %c0_30], %41 {strides = array<i32>} : memref<8x1xf32, #tpu.memory_space<vmem>>, vector<8x1xf32>,
    return
  }
  func.func @transform_0(%arg0: i32, %arg1: memref<1xi32, #tpu.memory_space<smem>>) -> (i32, i32) {
    %c0_i32 = arith.constant 0 : i32
    %c0_i32_0 = arith.constant 0 : i32
    return %arg0, %c0_i32 : i32, i32
  }
  func.func @transform_1(%arg0: i32, %arg1: memref<1xi32, #tpu.memory_space<smem>>) -> (i32, i32) {
    %c0_i32 = arith.constant 0 : i32
    %c0_i32_0 = arith.constant 0 : i32
    %c0_i32_1 = arith.constant 0 : i32
    return %c0_i32, %c0_i32_0 : i32, i32
  }
  func.func @transform_2(%arg0: i32, %arg1: memref<1xi32, #tpu.memory_space<smem>>) -> (i32, i32) {
    %c0_i32 = arith.constant 0 : i32
    %c0_i32_0 = arith.constant 0 : i32
    %c0_i32_1 = arith.constant 0 : i32
    return %c0_i32, %c0_i32_0 : i32, i32
  }
  func.func @transform_3(%arg0: i32, %arg1: memref<1xi32, #tpu.memory_space<smem>>) -> (i32, i32) {
    %c0_i32 = arith.constant 0 : i32
    %c0_i32_0 = arith.constant 0 : i32
    %c0_i32_1 = arith.constant 0 : i32
    return %c0_i32, %c0_i32_0 : i32, i32
  }
  func.func @transform_4(%arg0: i32, %arg1: memref<1xi32, #tpu.memory_space<smem>>) -> (i32, i32) {
    %c0_i32 = arith.constant 0 : i32
    %c0_i32_0 = arith.constant 0 : i32
    %c0_i32_1 = arith.constant 0 : i32
    return %c0_i32, %c0_i32_0 : i32, i32
  }
  func.func @transform_5(%arg0: i32, %arg1: memref<1xi32, #tpu.memory_space<smem>>) -> (i32, i32) {
    %c0_i32 = arith.constant 0 : i32
    %c0_i32_0 = arith.constant 0 : i32
    %c0_i32_1 = arith.constant 0 : i32
    return %c0_i32, %c0_i32_0 : i32, i32
  }
  func.func @transform_6(%arg0: i32, %arg1: memref<1xi32, #tpu.memory_space<smem>>) -> (i32, i32) {
    %c0_i32 = arith.constant 0 : i32
    %c0_i32_0 = arith.constant 0 : i32
    %c0_i32_1 = arith.constant 0 : i32
    return %c0_i32, %c0_i32_0 : i32, i32
  }
  func.func @transform_7(%arg0: i32, %arg1: memref<1xi32, #tpu.memory_space<smem>>) -> (i32, i32) {
    %c0_i32 = arith.constant 0 : i32
    %c0_i32_0 = arith.constant 0 : i32
    %c0_i32_1 = arith.constant 0 : i32
    return %c0_i32, %c0_i32_0 : i32, i32
  }
  func.func @transform_8(%arg0: i32, %arg1: memref<1xi32, #tpu.memory_space<smem>>) -> (i32, i32) {
    %c0_i32 = arith.constant 0 : i32
    %c0_i32_0 = arith.constant 0 : i32
    %c0_i32_1 = arith.constant 0 : i32
    return %c0_i32, %c0_i32_0 : i32, i32
  }
  func.func @transform_9(%arg0: i32, %arg1: memref<1xi32, #tpu.memory_space<smem>>) -> (i32, i32) {
    %c0_i32 = arith.constant 0 : i32
    %c0_i32_0 = arith.constant 0 : i32
    %c0_i32_1 = arith.constant 0 : i32
    return %c0_i32, %c0_i32_0 : i32, i32
  }
  func.func @transform_10(%arg0: i32, %arg1: memref<1xi32, #tpu.memory_space<smem>>) -> (i32, i32) {
    %c0_i32 = arith.constant 0 : i32
    %c0_i32_0 = arith.constant 0 : i32
    %c0_i32_1 = arith.constant 0 : i32
    return %c0_i32, %c0_i32_0 : i32, i32
  }
  func.func @transform_11(%arg0: i32, %arg1: memref<1xi32, #tpu.memory_space<smem>>) -> (i32, i32) {
    %c0_i32 = arith.constant 0 : i32
    %c0_i32_0 = arith.constant 0 : i32
    return %arg0, %c0_i32 : i32, i32
  }
}

</mosaic_0001>

<llo_original>
// kernel: tpu_custom_call.1
$region0: #{tpu_custom_call.1}
  #allocation0 [shape = 'u32[]', space=smem, size = 0x4, offset = 0x4, fixed_abs, tag = 'smem constant byte address 0x4 - core index']
  #allocation1 [shape = 'u32[144,128]{1,0:T(1,128)}', space=vmem, size = 0x12000, scoped, tag = 'internal scratch']
  #allocation2 [shape = 's32[1]{0}', space=sflag, size = 0x4, scoped, tag = 'scoped memory for tpu_custom_call.1']
  #allocation3 [shape = 's32[1]{0:T(128)S(6)}', space=smem, size = 0x200, scoped, tag = 'prefetched SMEM operand 0']
  #allocation4 [shape = 'f32[1,1]{1,0:T(1,128)S(1)}', space=vmem, size = 0x200, scoped, tag = 'scoped memory for tpu_custom_call.1']
  %s0 = inlined_call_operand.<no memory space> [shape: s32[1], index: 0, kind: input, shape index: {}]
  %s1 = inlined_call_operand.hbm [shape: f32[8,312], index: 1, kind: input, shape index: {}]
  %s2 = inlined_call_operand.hbm [shape: bf16[312,256], index: 2, kind: input, shape index: {}]
  %s3 = inlined_call_operand.vmem [shape: f32[1,256], index: 3, kind: input, shape index: {}]
  %s4 = inlined_call_operand.hbm [shape: bf16[256,128], index: 4, kind: input, shape index: {}]
  %s5 = inlined_call_operand.vmem [shape: f32[1,128], index: 5, kind: input, shape index: {}]
  %s6 = inlined_call_operand.hbm [shape: bf16[128,128], index: 6, kind: input, shape index: {}]
  %s7 = inlined_call_operand.vmem [shape: f32[1,128], index: 7, kind: input, shape index: {}]
  %s8 = inlined_call_operand.hbm [shape: bf16[128,128], index: 8, kind: input, shape index: {}]
  %s9 = inlined_call_operand.vmem [shape: f32[1,128], index: 9, kind: input, shape index: {}]
  %s10 = inlined_call_operand.vmem [shape: f32[1,128], index: 10, kind: input, shape index: {}]
  %s11 = inlined_call_operand.<no memory space> [shape: f32[1,1], index: 11, kind: input, shape index: {}]
  %s12 = inlined_call_operand.vmem [shape: f32[8,1], index: 12, kind: output, shape index: {}]
  %s13 = sld [smem:[#allocation0]]
  $region74: #{tpu_custom_call.1} parent=0
    _
  %s15 = ssub.s32 1, %s13
  %s16 = scalar_select 0, %s15, %s13
  %17 = sst [smem:[#allocation3]] %s0
  %v18 = vstv %s11
  %19 = vst [vmem:[#allocation4] sm:$0x1] %v18
  $region1: #{tpu_custom_call.1} parent=0
    #allocation5 [shape = 'u8[12288]{0}', space=vmem, size = 0x3000, scoped, tag = 'input window, operand 1, single buffered']
    #allocation6 [shape = 's32[1]{0}', space=sflag, size = 0x4, scoped, tag = 'scoped memory for tpu_custom_call.1']
    #allocation7 [shape = 'u8[159744]{0}', space=vmem, size = 0x27000, scoped, tag = 'input window, operand 2, single buffered']
    #allocation8 [shape = 's32[1]{0}', space=sflag, size = 0x4, scoped, tag = 'scoped memory for tpu_custom_call.1']
    #allocation9 [shape = 'u8[65536]{0}', space=vmem, size = 0x10000, scoped, tag = 'input window, operand 4, single buffered']
    #allocation10 [shape = 'u8[32768]{0}', space=vmem, size = 0x8000, scoped, tag = 'input window, operand 6, single buffered']
    #allocation11 [shape = 's32[1]{0}', space=sflag, size = 0x4, scoped, tag = 'scoped memory for tpu_custom_call.1']
    #allocation12 [shape = 'u8[32768]{0}', space=vmem, size = 0x8000, scoped, tag = 'input window, operand 8, single buffered']
    %20 = vsyncpa [#allocation6], 0
    %21 = vsyncpa [#allocation8], 0
    %22 = vsyncpa [#allocation11], 0
    // Predicated region
    $region2: #{tpu_custom_call.1} parent=1 // pred_check
      _
    $region3: #{tpu_custom_call.1} parent=1 // pred_check_branch
      %24 = sbr.rel (0) target = $region5
    $region4: #{tpu_custom_call.1} parent=1 // pred_region
      %s26 = ssub.s32 384, 384
      %27 = vsyncadd [#allocation6], %s26
      %s29 = sshll.u32 [#allocation5], 4
      %s30 = int_to_ptr.vmem [resolvable:$true] %s29
      %32 = dma.hbm_to_vmem [thread:$0]  %s1, 384, %s30, [#allocation6]
    $region5: #{tpu_custom_call.1} parent=1 // pred_fallthru
      _
    // Predicated region
    $region6: #{tpu_custom_call.1} parent=1 // pred_check
      _
    $region7: #{tpu_custom_call.1} parent=1 // pred_check_branch
      %34 = sbr.rel (0) target = $region9
    $region8: #{tpu_custom_call.1} parent=1 // pred_region
      %s36 = ssub.s32 4992, 4992
      %37 = vsyncadd [#allocation8], %s36
      %s38 = sshll.u32 [#allocation7], 4
      %s39 = int_to_ptr.vmem [resolvable:$true] %s38
      %44 = dma.hbm_to_vmem [thread:$0]  %s2, 4992, %s39, [#allocation8], 128, 128, 8
    $region9: #{tpu_custom_call.1} parent=1 // pred_fallthru
      _
    // Predicated region
    $region10: #{tpu_custom_call.1} parent=1 // pred_check
      _
    $region11: #{tpu_custom_call.1} parent=1 // pred_check_branch
      %46 = sbr.rel (0) target = $region13
    $region12: #{tpu_custom_call.1} parent=1 // pred_region
      _
    $region13: #{tpu_custom_call.1} parent=1 // pred_fallthru
      _
    // Predicated region
    $region14: #{tpu_custom_call.1} parent=1 // pred_check
      _
    $region15: #{tpu_custom_call.1} parent=1 // pred_check_branch
      %48 = sbr.rel (0) target = $region17
    $region16: #{tpu_custom_call.1} parent=1 // pred_region
      %s50 = ssub.s32 2048, 2048
      %51 = vsyncadd [#allocation8], %s50
      %s52 = sshll.u32 [#allocation9], 4
      %s53 = int_to_ptr.vmem [resolvable:$true] %s52
      %58 = dma.hbm_to_vmem [thread:$0]  %s4, 2048, %s53, [#allocation8], 64, 64, 4
    $region17: #{tpu_custom_call.1} parent=1 // pred_fallthru
      _
    // Predicated region
    $region18: #{tpu_custom_call.1} parent=1 // pred_check
      _
    $region19: #{tpu_custom_call.1} parent=1 // pred_check_branch
      %60 = sbr.rel (0) target = $region21
    $region20: #{tpu_custom_call.1} parent=1 // pred_region
      _
    $region21: #{tpu_custom_call.1} parent=1 // pred_fallthru
      _
    // Predicated region
    $region22: #{tpu_custom_call.1} parent=1 // pred_check
      _
    $region23: #{tpu_custom_call.1} parent=1 // pred_check_branch
      %62 = sbr.rel (0) target = $region25
    $region24: #{tpu_custom_call.1} parent=1 // pred_region
      %s64 = ssub.s32 1024, 1024
      %65 = vsyncadd [#allocation11], %s64
      %s66 = sshll.u32 [#allocation10], 4
      %s67 = int_to_ptr.vmem [resolvable:$true] %s66
      %72 = dma.hbm_to_vmem [thread:$0]  %s6, 1024, %s67, [#allocation11], 64, 64, 4
    $region25: #{tpu_custom_call.1} parent=1 // pred_fallthru
      _
    // Predicated region
    $region26: #{tpu_custom_call.1} parent=1 // pred_check
      _
    $region27: #{tpu_custom_call.1} parent=1 // pred_check_branch
      %74 = sbr.rel (0) target = $region29
    $region28: #{tpu_custom_call.1} parent=1 // pred_region
      _
    $region29: #{tpu_custom_call.1} parent=1 // pred_fallthru
      _
    // Predicated region
    $region30: #{tpu_custom_call.1} parent=1 // pred_check
      _
    $region31: #{tpu_custom_call.1} parent=1 // pred_check_branch
      %76 = sbr.rel (0) target = $region33
    $region32: #{tpu_custom_call.1} parent=1 // pred_region
      %s78 = ssub.s32 1024, 1024
      %79 = vsyncadd [#allocation11], %s78
      %s80 = sshll.u32 [#allocation12], 4
      %s81 = int_to_ptr.vmem [resolvable:$true] %s80
      %86 = dma.hbm_to_vmem [thread:$0]  %s8, 1024, %s81, [#allocation11], 64, 64, 4
    $region33: #{tpu_custom_call.1} parent=1 // pred_fallthru
      _
    // Predicated region
    $region34: #{tpu_custom_call.1} parent=1 // pred_check
      _
    $region35: #{tpu_custom_call.1} parent=1 // pred_check_branch
      %88 = sbr.rel (0) target = $region37
    $region36: #{tpu_custom_call.1} parent=1 // pred_region
      _
    $region37: #{tpu_custom_call.1} parent=1 // pred_fallthru
      _
    // Predicated region
    $region38: #{tpu_custom_call.1} parent=1 // pred_check
      _
    $region39: #{tpu_custom_call.1} parent=1 // pred_check_branch
      %90 = sbr.rel (0) target = $region41
    $region40: #{tpu_custom_call.1} parent=1 // pred_region
      _
    $region41: #{tpu_custom_call.1} parent=1 // pred_fallthru
      _
    // Predicated region
    $region42: #{tpu_custom_call.1} parent=1 // pred_check
      _
    $region43: #{tpu_custom_call.1} parent=1 // pred_check_branch
      %92 = sbr.rel (0) target = $region45
    $region44: #{tpu_custom_call.1} parent=1 // pred_region
      _
    $region45: #{tpu_custom_call.1} parent=1 // pred_fallthru
      _
    // Predicated region
    $region46: #{tpu_custom_call.1} parent=1 // pred_check
      _
    $region47: #{tpu_custom_call.1} parent=1 // pred_check_branch
      %94 = sbr.rel (0) target = $region49
    $region48: #{tpu_custom_call.1} parent=1 // pred_region
      %95 = dma.done [#allocation6], 384
    $region49: #{tpu_custom_call.1} parent=1 // pred_fallthru
      _
    // Predicated region
    $region50: #{tpu_custom_call.1} parent=1 // pred_check
      _
    $region51: #{tpu_custom_call.1} parent=1 // pred_check_branch
      %97 = sbr.rel (0) target = $region53
    $region52: #{tpu_custom_call.1} parent=1 // pred_region
      %98 = dma.done [#allocation8], 4992
    $region53: #{tpu_custom_call.1} parent=1 // pred_fallthru
      _
    // Predicated region
    $region54: #{tpu_custom_call.1} parent=1 // pred_check
      _
    $region55: #{tpu_custom_call.1} parent=1 // pred_check_branch
      %100 = sbr.rel (0) target = $region57
    $region56: #{tpu_custom_call.1} parent=1 // pred_region
      %101 = dma.done [#allocation8], 2048
    $region57: #{tpu_custom_call.1} parent=1 // pred_fallthru
      _
    // Predicated region
    $region58: #{tpu_custom_call.1} parent=1 // pred_check
      _
    $region59: #{tpu_custom_call.1} parent=1 // pred_check_branch
      %103 = sbr.rel (0) target = $region61
    $region60: #{tpu_custom_call.1} parent=1 // pred_region
      %104 = dma.done [#allocation11], 1024
    $region61: #{tpu_custom_call.1} parent=1 // pred_fallthru
      _
    // Predicated region
    $region62: #{tpu_custom_call.1} parent=1 // pred_check
      _
    $region63: #{tpu_custom_call.1} parent=1 // pred_check_branch
      %106 = sbr.rel (0) target = $region65
    $region64: #{tpu_custom_call.1} parent=1 // pred_region
      %107 = dma.done [#allocation11], 1024
    $region65: #{tpu_custom_call.1} parent=1 // pred_fallthru
      _
    %v109 = vld [vmem:[#allocation5] sm:$0xff]
    %v110 = vld [vmem:[#allocation5 + $0x8] sm:$0xff]
    %v111 = vld [vmem:[#allocation5 + $0x10] sm:$0xff]
    %v112 = vpack.c.bf16 %v109, %v109
    %v113 = vpack.c.bf16 %v110, %v110
    %v114 = vpack.c.bf16 %v111, %v111
    %v115 = vld [vmem:[#allocation7] sm:$0xff]
    %v116 = vld [vmem:[#allocation7 + $0x8] sm:$0xff]
    %v117 = vld [vmem:[#allocation7 + $0x10] sm:$0xff]
    %v118 = vld [vmem:[#allocation7 + $0x18] sm:$0xff]
    %v119 = vld [vmem:[#allocation7 + $0x20] sm:$0xff]
    %v120 = vld [vmem:[#allocation7 + $0x28] sm:$0xff]
    %v121 = vld [vmem:[#allocation7 + $0x30] sm:$0xff]
    %v122 = vld [vmem:[#allocation7 + $0x38] sm:$0xff]
    %v123 = vld [vmem:[#allocation7 + $0x40] sm:$0xff]
    %v124 = vld [vmem:[#allocation7 + $0x48] sm:$0xff]
    %v125 = vld [vmem:[#allocation7 + $0x50] sm:$0xff]
    %v126 = vld [vmem:[#allocation7 + $0x58] sm:$0xff]
    %v127 = vld [vmem:[#allocation7 + $0x60] sm:$0xff]
    %v128 = vld [vmem:[#allocation7 + $0x68] sm:$0xff]
    %v129 = vld [vmem:[#allocation7 + $0x70] sm:$0xff]
    %v130 = vld [vmem:[#allocation7 + $0x78] sm:$0xff]
    %v131 = vld [vmem:[#allocation7 + $0x80] sm:$0xff]
    %v132 = vld [vmem:[#allocation7 + $0x88] sm:$0xff]
    %v133 = vld [vmem:[#allocation7 + $0x90] sm:$0xff]
    %v134 = vld [vmem:[#allocation7 + $0x98] sm:$0xff]
    %v135 = vld [vmem:[#allocation7 + $0xa0] sm:$0xff]
    %v136 = vld [vmem:[#allocation7 + $0xa8] sm:$0xff]
    %v137 = vld [vmem:[#allocation7 + $0xb0] sm:$0xff]
    %v138 = vld [vmem:[#allocation7 + $0xb8] sm:$0xff]
    %v139 = vld [vmem:[#allocation7 + $0xc0] sm:$0xff]
    %v140 = vld [vmem:[#allocation7 + $0xc8] sm:$0xff]
    %v141 = vld [vmem:[#allocation7 + $0xd0] sm:$0xff]
    %v142 = vld [vmem:[#allocation7 + $0xd8] sm:$0xff]
    %v143 = vld [vmem:[#allocation7 + $0xe0] sm:$0xff]
    %v144 = vld [vmem:[#allocation7 + $0xe8] sm:$0xff]
    %v145 = vld [vmem:[#allocation7 + $0xf0] sm:$0xff]
    %v146 = vld [vmem:[#allocation7 + $0xf8] sm:$0xff]
    %v147 = vld [vmem:[#allocation7 + $0x100] sm:$0xff]
    %v148 = vld [vmem:[#allocation7 + $0x108] sm:$0xff]
    %v149 = vld [vmem:[#allocation7 + $0x110] sm:$0xff]
    %v150 = vld [vmem:[#allocation7 + $0x118] sm:$0xff]
    %v151 = vld [vmem:[#allocation7 + $0x120] sm:$0xff]
    %v152 = vld [vmem:[#allocation7 + $0x128] sm:$0xff]
    %v153 = vld [vmem:[#allocation7 + $0x130] sm:$0xff]
    %v154 = vld [vmem:[%s3] sm:$0x3]
    %v156 = vlaneseq
    %v157 = vshrl.u32 %v156, 7
    %v158 = vsub.s32 0, %v157
    %v159 = vrot.slane %v154, %v158
    %v160 = vlaneseq
    %v161 = vshrl.u32 %v160, 7
    %v162 = vsub.s32 1, %v161
    %v163 = vrot.slane %v154, %v162
    %v205 = vunpack.c.l.b16 %v115
    %v206 = vunpack.c.h.b16 %v115
    %v207 = vunpack.c.l.b16 %v116
    %v208 = vunpack.c.h.b16 %v116
    %v209 = vunpack.c.l.b16 %v117
    %v210 = vunpack.c.h.b16 %v117
    %v211 = vunpack.c.l.b16 %v118
    %v212 = vunpack.c.h.b16 %v118
    %v213 = vunpack.c.l.b16 %v119
    %v214 = vunpack.c.h.b16 %v119
    %v215 = vunpack.c.l.b16 %v120
    %v216 = vunpack.c.h.b16 %v120
    %v217 = vunpack.c.l.b16 %v121
    %v218 = vunpack.c.h.b16 %v121
    %v219 = vunpack.c.l.b16 %v122
    %v220 = vunpack.c.h.b16 %v122
    %v221 = vunpack.c.l.b16 %v123
    %v222 = vunpack.c.h.b16 %v123
    %v223 = vunpack.c.l.b16 %v124
    %v224 = vunpack.c.h.b16 %v124
    %v225 = vunpack.c.l.b16 %v125
    %v226 = vunpack.c.h.b16 %v125
    %v227 = vunpack.c.l.b16 %v126
    %v228 = vunpack.c.h.b16 %v126
    %v229 = vunpack.c.l.b16 %v127
    %v230 = vunpack.c.h.b16 %v127
    %v231 = vunpack.c.l.b16 %v128
    %v232 = vunpack.c.h.b16 %v128
    %v233 = vunpack.c.l.b16 %v129
    %v234 = vunpack.c.h.b16 %v129
    %v235 = vunpack.c.l.b16 %v130
    %v236 = vunpack.c.h.b16 %v130
    %v237 = vunpack.c.l.b16 %v131
    %v238 = vunpack.c.h.b16 %v131
    %v239 = vunpack.c.l.b16 %v132
    %v240 = vunpack.c.h.b16 %v132
    %v241 = vunpack.c.l.b16 %v133
    %v242 = vunpack.c.h.b16 %v133
    %v243 = vunpack.c.l.b16 %v134
    %v244 = vunpack.c.h.b16 %v134
    %v245 = vunpack.c.l.b16 %v135
    %v246 = vunpack.c.h.b16 %v135
    %v247 = vunpack.c.l.b16 %v136
    %v248 = vunpack.c.h.b16 %v136
    %v249 = vunpack.c.l.b16 %v137
    %v250 = vunpack.c.h.b16 %v137
    %v251 = vunpack.c.l.b16 %v138
    %v252 = vunpack.c.h.b16 %v138
    %v253 = vunpack.c.l.b16 %v139
    %v254 = vunpack.c.h.b16 %v139
    %v255 = vunpack.c.l.b16 %v140
    %v256 = vunpack.c.h.b16 %v140
    %v257 = vunpack.c.l.b16 %v141
    %v258 = vunpack.c.h.b16 %v141
    %v259 = vunpack.c.l.b16 %v142
    %v260 = vunpack.c.h.b16 %v142
    %v261 = vunpack.c.l.b16 %v143
    %v262 = vunpack.c.h.b16 %v143
    %v263 = vunpack.c.l.b16 %v144
    %v264 = vunpack.c.h.b16 %v144
    %v265 = vunpack.c.l.b16 %v145
    %v266 = vunpack.c.h.b16 %v145
    %v267 = vunpack.c.l.b16 %v146
    %v268 = vunpack.c.h.b16 %v146
    %v269 = vunpack.c.l.b16 %v147
    %v270 = vunpack.c.h.b16 %v147
    %v271 = vunpack.c.l.b16 %v148
    %v272 = vunpack.c.h.b16 %v148
    %v273 = vunpack.c.l.b16 %v149
    %v274 = vunpack.c.h.b16 %v149
    %v275 = vunpack.c.l.b16 %v150
    %v276 = vunpack.c.h.b16 %v150
    %v277 = vunpack.c.l.b16 %v151
    %v278 = vunpack.c.h.b16 %v151
    %v279 = vunpack.c.l.b16 %v152
    %v280 = vunpack.c.h.b16 %v152
    %v281 = vunpack.c.l.b16 %v153
    %v282 = vunpack.c.h.b16 %v153
    %v283 = vpack.c.b16 %v207, %v205
    %v284 = vpack.c.b16 %v208, %v206
    %v285 = vpack.c.b16 %v211, %v209
    %v286 = vpack.c.b16 %v212, %v210
    %v287 = vpack.c.b16 %v215, %v213
    %v288 = vpack.c.b16 %v216, %v214
    %v289 = vpack.c.b16 %v219, %v217
    %v290 = vpack.c.b16 %v220, %v218
    %v291 = vpack.c.b16 %v223, %v221
    %v292 = vpack.c.b16 %v224, %v222
    %v293 = vpack.c.b16 %v227, %v225
    %v294 = vpack.c.b16 %v228, %v226
    %v295 = vpack.c.b16 %v231, %v229
    %v296 = vpack.c.b16 %v232, %v230
    %v297 = vpack.c.b16 %v235, %v233
    %v298 = vpack.c.b16 %v236, %v234
    %v299 = vpack.c.b16 %v239, %v237
    %v300 = vpack.c.b16 %v240, %v238
    %v301 = vpack.c.b16 %v243, %v241
    %v302 = vpack.c.b16 %v244, %v242
    %v303 = vpack.c.b16 %v247, %v245
    %v304 = vpack.c.b16 %v248, %v246
    %v305 = vpack.c.b16 %v251, %v249
    %v306 = vpack.c.b16 %v252, %v250
    %v307 = vpack.c.b16 %v255, %v253
    %v308 = vpack.c.b16 %v256, %v254
    %v309 = vpack.c.b16 %v259, %v257
    %v310 = vpack.c.b16 %v260, %v258
    %v311 = vpack.c.b16 %v263, %v261
    %v312 = vpack.c.b16 %v264, %v262
    %v313 = vpack.c.b16 %v267, %v265
    %v314 = vpack.c.b16 %v268, %v266
    %v315 = vpack.c.b16 %v271, %v269
    %v316 = vpack.c.b16 %v272, %v270
    %v317 = vpack.c.b16 %v275, %v273
    %v318 = vpack.c.b16 %v276, %v274
    %v319 = vpack.c.b16 %v279, %v277
    %v320 = vpack.c.b16 %v280, %v278
    %v321 = vpack.c.b16 %v281, %v281
    %v322 = vpack.c.b16 %v282, %v282
    %vm361 = vcmask 457728
    %v363 = vsel %vm361, %v114, 0
    %vm365 = vcmask 1043456
    %v367 = vsel %vm365, %v321, 0
    %v370 = vsel %vm365, %v322, 0
    %372 = vmatprep.subr.bf16.mxu0 %v284
    %373 = vmatpush1.bf16.msra.mxu0 %v283
    %374 = vmatprep.subr.bf16.mxu0 %v286
    %375 = vmatpush1.bf16.msra.mxu0 %v285
    %376 = vmatprep.subr.bf16.mxu0 %v288
    %377 = vmatpush1.bf16.msra.mxu0 %v287
    %378 = vmatprep.subr.bf16.mxu0 %v290
    %379 = vmatpush1.bf16.msra.mxu0 %v289
    %380 = vmatprep.subr.bf16.mxu0 %v292
    %381 = vmatpush1.bf16.msra.mxu0 %v291
    %382 = vmatprep.subr.bf16.mxu0 %v294
    %383 = vmatpush1.bf16.msra.mxu0 %v293
    %384 = vmatprep.subr.bf16.mxu0 %v296
    %385 = vmatpush1.bf16.msra.mxu0 %v295
    %386 = vmatprep.subr.bf16.mxu0 %v298
    %387 = vmatpush1.bf16.msra.mxu0 %v297
    %388 = vmatprep.subr.bf16.mxu0 %v300
    %389 = vmatpush1.bf16.msra.mxu0 %v299
    %390 = vmatprep.subr.bf16.mxu0 %v302
    %391 = vmatpush1.bf16.msra.mxu0 %v301
    %392 = vmatprep.subr.bf16.mxu0 %v304
    %393 = vmatpush1.bf16.msra.mxu0 %v303
    %394 = vmatprep.subr.bf16.mxu0 %v306
    %395 = vmatpush1.bf16.msra.mxu0 %v305
    %396 = vmatprep.subr.bf16.mxu0 %v308
    %397 = vmatpush1.bf16.msra.mxu0 %v307
    %398 = vmatprep.subr.bf16.mxu0 %v310
    %399 = vmatpush1.bf16.msra.mxu0 %v309
    %400 = vmatprep.subr.bf16.mxu0 %v312
    %401 = vmatpush1.bf16.msra.mxu0 %v311
    %402 = vmatprep.subr.bf16.mxu0 %v314
    %403 = vmatpush1.bf16.msra.mxu0 %v313
    %404 = vmatprep.mubr.bf16.mxu0 %v113
    %405 = vmatmul.mubr.bf16.gmra.mrb[0].mxu0 %v112
    %v406 = vpop.f32.mrb[0].mxu0
    %v407 = vadd.f32 %v159, %v406
    %v408 = vpop.f32.mrb[0].mxu0
    %v409 = vadd.f32 %v163, %v408
    %v410 = vpop.f32.mrb[0].mxu0
    %v411 = vpop.f32.mrb[0].mxu0
    %412 = vdwg.mxu0
    %413 = vmatprep.subr.bf16.mxu0 %v316
    %414 = vmatpush1.bf16.msra.mxu0 %v315
    %415 = vmatprep.subr.bf16.mxu0 %v318
    %416 = vmatpush1.bf16.msra.mxu0 %v317
    %417 = vmatprep.subr.bf16.mxu0 %v320
    %418 = vmatpush1.bf16.msra.mxu0 %v319
    %419 = vmatprep.subr.bf16.mxu0 %v370
    %420 = vmatpush1.bf16.msra.mxu0 %v367
    %421 = vmatprep.subr.bf16.mxu0 0
    %422 = vmatpush1.bf16.msra.mxu0 0
    %423 = vmatprep.subr.bf16.mxu0 0
    %424 = vmatpush1.bf16.msra.mxu0 0
    %425 = vmatprep.subr.bf16.mxu0 0
    %426 = vmatpush1.bf16.msra.mxu0 0
    %427 = vmatprep.subr.bf16.mxu0 0
    %428 = vmatpush1.bf16.msra.mxu0 0
    %429 = vmatprep.subr.bf16.mxu0 0
    %430 = vmatpush1.bf16.msra.mxu0 0
    %431 = vmatprep.subr.bf16.mxu0 0
    %432 = vmatpush1.bf16.msra.mxu0 0
    %433 = vmatprep.subr.bf16.mxu0 0
    %434 = vmatpush1.bf16.msra.mxu0 0
    %435 = vmatprep.subr.bf16.mxu0 0
    %436 = vmatpush1.bf16.msra.mxu0 0
    %437 = vmatprep.subr.bf16.mxu0 0
    %438 = vmatpush1.bf16.msra.mxu0 0
    %439 = vmatprep.subr.bf16.mxu0 0
    %440 = vmatpush1.bf16.msra.mxu0 0
    %441 = vmatprep.subr.bf16.mxu0 0
    %442 = vmatpush1.bf16.msra.mxu0 0
    %443 = vmatprep.subr.bf16.mxu0 0
    %444 = vmatpush1.bf16.msra.mxu0 0
    %445 = vmatprep.mubr.bf16.mxu0 0
    %446 = vmatmul.mubr.bf16.gmra.mrb[0].mxu0 %v363
    %v447 = vpop.f32.mrb[0].mxu0
    %v448 = vadd.f32 %v407, %v447
    %v449 = vpop.f32.mrb[0].mxu0
    %v450 = vadd.f32 %v409, %v449
    %v451 = vpop.f32.mrb[0].mxu0
    %v452 = vpop.f32.mrb[0].mxu0
    %453 = vdwg.mxu0
    %v454 = vmax.f32 %v448, 0.0
    %v455 = vmax.f32 %v450, 0.0
    %v456 = vpack.c.bf16 %v454, %v454
    %v457 = vpack.c.bf16 %v455, %v455
    %v458 = vld [vmem:[#allocation9] sm:$0xf]
    %v459 = vld [vmem:[#allocation9 + $0x4] sm:$0xf]
    %v460 = vld [vmem:[#allocation9 + $0x8] sm:$0xf]
    %v461 = vld [vmem:[#allocation9 + $0xc] sm:$0xf]
    %v462 = vld [vmem:[#allocation9 + $0x10] sm:$0xf]
    %v463 = vld [vmem:[#allocation9 + $0x14] sm:$0xf]
    %v464 = vld [vmem:[#allocation9 + $0x18] sm:$0xf]
    %v465 = vld [vmem:[#allocation9 + $0x1c] sm:$0xf]
    %v466 = vld [vmem:[#allocation9 + $0x20] sm:$0xf]
    %v467 = vld [vmem:[#allocation9 + $0x24] sm:$0xf]
    %v468 = vld [vmem:[#allocation9 + $0x28] sm:$0xf]
    %v469 = vld [vmem:[#allocation9 + $0x2c] sm:$0xf]
    %v470 = vld [vmem:[#allocation9 + $0x30] sm:$0xf]
    %v471 = vld [vmem:[#allocation9 + $0x34] sm:$0xf]
    %v472 = vld [vmem:[#allocation9 + $0x38] sm:$0xf]
    %v473 = vld [vmem:[#allocation9 + $0x3c] sm:$0xf]
    %v474 = vld [vmem:[#allocation9 + $0x40] sm:$0xf]
    %v475 = vld [vmem:[#allocation9 + $0x44] sm:$0xf]
    %v476 = vld [vmem:[#allocation9 + $0x48] sm:$0xf]
    %v477 = vld [vmem:[#allocation9 + $0x4c] sm:$0xf]
    %v478 = vld [vmem:[#allocation9 + $0x50] sm:$0xf]
    %v479 = vld [vmem:[#allocation9 + $0x54] sm:$0xf]
    %v480 = vld [vmem:[#allocation9 + $0x58] sm:$0xf]
    %v481 = vld [vmem:[#allocation9 + $0x5c] sm:$0xf]
    %v482 = vld [vmem:[#allocation9 + $0x60] sm:$0xf]
    %v483 = vld [vmem:[#allocation9 + $0x64] sm:$0xf]
    %v484 = vld [vmem:[#allocation9 + $0x68] sm:$0xf]
    %v485 = vld [vmem:[#allocation9 + $0x6c] sm:$0xf]
    %v486 = vld [vmem:[#allocation9 + $0x70] sm:$0xf]
    %v487 = vld [vmem:[#allocation9 + $0x74] sm:$0xf]
    %v488 = vld [vmem:[#allocation9 + $0x78] sm:$0xf]
    %v489 = vld [vmem:[#allocation9 + $0x7c] sm:$0xf]
    %v490 = vld [vmem:[%s5] sm:$0x1]
    %v492 = vlaneseq
    %v493 = vshrl.u32 %v492, 7
    %v494 = vsub.s32 0, %v493
    %v495 = vrot.slane %v490, %v494
    %v529 = vunpack.c.l.b16 %v458
    %v530 = vunpack.c.l.b16 %v459
    %v531 = vunpack.c.l.b16 %v460
    %v532 = vunpack.c.l.b16 %v461
    %v533 = vunpack.c.l.b16 %v462
    %v534 = vunpack.c.l.b16 %v463
    %v535 = vunpack.c.l.b16 %v464
    %v536 = vunpack.c.l.b16 %v465
    %v537 = vunpack.c.l.b16 %v466
    %v538 = vunpack.c.l.b16 %v467
    %v539 = vunpack.c.l.b16 %v468
    %v540 = vunpack.c.l.b16 %v469
    %v541 = vunpack.c.l.b16 %v470
    %v542 = vunpack.c.l.b16 %v471
    %v543 = vunpack.c.l.b16 %v472
    %v544 = vunpack.c.l.b16 %v473
    %v545 = vunpack.c.l.b16 %v474
    %v546 = vunpack.c.l.b16 %v475
    %v547 = vunpack.c.l.b16 %v476
    %v548 = vunpack.c.l.b16 %v477
    %v549 = vunpack.c.l.b16 %v478
    %v550 = vunpack.c.l.b16 %v479
    %v551 = vunpack.c.l.b16 %v480
    %v552 = vunpack.c.l.b16 %v481
    %v553 = vunpack.c.l.b16 %v482
    %v554 = vunpack.c.l.b16 %v483
    %v555 = vunpack.c.l.b16 %v484
    %v556 = vunpack.c.l.b16 %v485
    %v557 = vunpack.c.l.b16 %v486
    %v558 = vunpack.c.l.b16 %v487
    %v559 = vunpack.c.l.b16 %v488
    %v560 = vunpack.c.l.b16 %v489
    %v561 = vpack.c.b16 %v530, %v529
    %v562 = vpack.c.b16 %v532, %v531
    %v563 = vpack.c.b16 %v534, %v533
    %v564 = vpack.c.b16 %v536, %v535
    %v565 = vpack.c.b16 %v538, %v537
    %v566 = vpack.c.b16 %v540, %v539
    %v567 = vpack.c.b16 %v542, %v541
    %v568 = vpack.c.b16 %v544, %v543
    %v569 = vpack.c.b16 %v546, %v545
    %v570 = vpack.c.b16 %v548, %v547
    %v571 = vpack.c.b16 %v550, %v549
    %v572 = vpack.c.b16 %v552, %v551
    %v573 = vpack.c.b16 %v554, %v553
    %v574 = vpack.c.b16 %v556, %v555
    %v575 = vpack.c.b16 %v558, %v557
    %v576 = vpack.c.b16 %v560, %v559
    %593 = vmatprep.subr.bf16.mxu0 0
    %594 = vmatpush1.bf16.msra.mxu0 %v561
    %595 = vmatprep.subr.bf16.mxu0 0
    %596 = vmatpush1.bf16.msra.mxu0 %v562
    %597 = vmatprep.subr.bf16.mxu0 0
    %598 = vmatpush1.bf16.msra.mxu0 %v563
    %599 = vmatprep.subr.bf16.mxu0 0
    %600 = vmatpush1.bf16.msra.mxu0 %v564
    %601 = vmatprep.subr.bf16.mxu0 0
    %602 = vmatpush1.bf16.msra.mxu0 %v565
    %603 = vmatprep.subr.bf16.mxu0 0
    %604 = vmatpush1.bf16.msra.mxu0 %v566
    %605 = vmatprep.subr.bf16.mxu0 0
    %606 = vmatpush1.bf16.msra.mxu0 %v567
    %607 = vmatprep.subr.bf16.mxu0 0
    %608 = vmatpush1.bf16.msra.mxu0 %v568
    %609 = vmatprep.subr.bf16.mxu0 0
    %610 = vmatpush1.bf16.msra.mxu0 %v569
    %611 = vmatprep.subr.bf16.mxu0 0
    %612 = vmatpush1.bf16.msra.mxu0 %v570
    %613 = vmatprep.subr.bf16.mxu0 0
    %614 = vmatpush1.bf16.msra.mxu0 %v571
    %615 = vmatprep.subr.bf16.mxu0 0
    %616 = vmatpush1.bf16.msra.mxu0 %v572
    %617 = vmatprep.subr.bf16.mxu0 0
    %618 = vmatpush1.bf16.msra.mxu0 %v573
    %619 = vmatprep.subr.bf16.mxu0 0
    %620 = vmatpush1.bf16.msra.mxu0 %v574
    %621 = vmatprep.subr.bf16.mxu0 0
    %622 = vmatpush1.bf16.msra.mxu0 %v575
    %623 = vmatprep.subr.bf16.mxu0 0
    %624 = vmatpush1.bf16.msra.mxu0 %v576
    %625 = vmatprep.mubr.bf16.mxu0 %v457
    %626 = vmatmul.mubr.bf16.gmra.mrb[0].mxu0 %v456
    %v627 = vpop.f32.mrb[0].mxu0
    %v628 = vadd.f32 %v495, %v627
    %v629 = vpop.f32.mrb[0].mxu0
    %v630 = vpop.f32.mrb[0].mxu0
    %v631 = vpop.f32.mrb[0].mxu0
    %632 = vdwg.mxu0
    %v633 = vmax.f32 %v628, 0.0
    %v634 = vpack.c.bf16 %v633, %v633
    %v635 = vld [vmem:[#allocation10] sm:$0xf]
    %v636 = vld [vmem:[#allocation10 + $0x4] sm:$0xf]
    %v637 = vld [vmem:[#allocation10 + $0x8] sm:$0xf]
    %v638 = vld [vmem:[#allocation10 + $0xc] sm:$0xf]
    %v639 = vld [vmem:[#allocation10 + $0x10] sm:$0xf]
    %v640 = vld [vmem:[#allocation10 + $0x14] sm:$0xf]
    %v641 = vld [vmem:[#allocation10 + $0x18] sm:$0xf]
    %v642 = vld [vmem:[#allocation10 + $0x1c] sm:$0xf]
    %v643 = vld [vmem:[#allocation10 + $0x20] sm:$0xf]
    %v644 = vld [vmem:[#allocation10 + $0x24] sm:$0xf]
    %v645 = vld [vmem:[#allocation10 + $0x28] sm:$0xf]
    %v646 = vld [vmem:[#allocation10 + $0x2c] sm:$0xf]
    %v647 = vld [vmem:[#allocation10 + $0x30] sm:$0xf]
    %v648 = vld [vmem:[#allocation10 + $0x34] sm:$0xf]
    %v649 = vld [vmem:[#allocation10 + $0x38] sm:$0xf]
    %v650 = vld [vmem:[#allocation10 + $0x3c] sm:$0xf]
    %v651 = vld [vmem:[%s7] sm:$0x1]
    %v653 = vlaneseq
    %v654 = vshrl.u32 %v653, 7
    %v655 = vsub.s32 0, %v654
    %v656 = vrot.slane %v651, %v655
    %v674 = vunpack.c.l.b16 %v635
    %v675 = vunpack.c.l.b16 %v636
    %v676 = vunpack.c.l.b16 %v637
    %v677 = vunpack.c.l.b16 %v638
    %v678 = vunpack.c.l.b16 %v639
    %v679 = vunpack.c.l.b16 %v640
    %v680 = vunpack.c.l.b16 %v641
    %v681 = vunpack.c.l.b16 %v642
    %v682 = vunpack.c.l.b16 %v643
    %v683 = vunpack.c.l.b16 %v644
    %v684 = vunpack.c.l.b16 %v645
    %v685 = vunpack.c.l.b16 %v646
    %v686 = vunpack.c.l.b16 %v647
    %v687 = vunpack.c.l.b16 %v648
    %v688 = vunpack.c.l.b16 %v649
    %v689 = vunpack.c.l.b16 %v650
    %v690 = vpack.c.b16 %v675, %v674
    %v691 = vpack.c.b16 %v677, %v676
    %v692 = vpack.c.b16 %v679, %v678
    %v693 = vpack.c.b16 %v681, %v680
    %v694 = vpack.c.b16 %v683, %v682
    %v695 = vpack.c.b16 %v685, %v684
    %v696 = vpack.c.b16 %v687, %v686
    %v697 = vpack.c.b16 %v689, %v688
    %706 = vmatprep.subr.bf16.mxu0 0
    %707 = vmatpush1.bf16.msra.mxu0 %v690
    %708 = vmatprep.subr.bf16.mxu0 0
    %709 = vmatpush1.bf16.msra.mxu0 %v691
    %710 = vmatprep.subr.bf16.mxu0 0
    %711 = vmatpush1.bf16.msra.mxu0 %v692
    %712 = vmatprep.subr.bf16.mxu0 0
    %713 = vmatpush1.bf16.msra.mxu0 %v693
    %714 = vmatprep.subr.bf16.mxu0 0
    %715 = vmatpush1.bf16.msra.mxu0 %v694
    %716 = vmatprep.subr.bf16.mxu0 0
    %717 = vmatpush1.bf16.msra.mxu0 %v695
    %718 = vmatprep.subr.bf16.mxu0 0
    %719 = vmatpush1.bf16.msra.mxu0 %v696
    %720 = vmatprep.subr.bf16.mxu0 0
    %721 = vmatpush1.bf16.msra.mxu0 %v697
    %722 = vmatprep.subr.bf16.mxu0 0
    %723 = vmatpush1.bf16.msra.mxu0 0
    %724 = vmatprep.subr.bf16.mxu0 0
    %725 = vmatpush1.bf16.msra.mxu0 0
    %726 = vmatprep.subr.bf16.mxu0 0
    %727 = vmatpush1.bf16.msra.mxu0 0
    %728 = vmatprep.subr.bf16.mxu0 0
    %729 = vmatpush1.bf16.msra.mxu0 0
    %730 = vmatprep.subr.bf16.mxu0 0
    %731 = vmatpush1.bf16.msra.mxu0 0
    %732 = vmatprep.subr.bf16.mxu0 0
    %733 = vmatpush1.bf16.msra.mxu0 0
    %734 = vmatprep.subr.bf16.mxu0 0
    %735 = vmatpush1.bf16.msra.mxu0 0
    %736 = vmatprep.subr.bf16.mxu0 0
    %737 = vmatpush1.bf16.msra.mxu0 0
    %738 = vmatprep.mubr.bf16.mxu0 0
    %739 = vmatmul.mubr.bf16.gmra.mrb[0].mxu0 %v634
    %v740 = vpop.f32.mrb[0].mxu0
    %v741 = vadd.f32 %v656, %v740
    %v742 = vpop.f32.mrb[0].mxu0
    %v743 = vpop.f32.mrb[0].mxu0
    %v744 = vpop.f32.mrb[0].mxu0
    %745 = vdwg.mxu0
    %v746 = vmax.f32 %v741, 0.0
    %v747 = vpack.c.bf16 %v746, %v746
    %v748 = vld [vmem:[#allocation12] sm:$0xf]
    %v749 = vld [vmem:[#allocation12 + $0x4] sm:$0xf]
    %v750 = vld [vmem:[#allocation12 + $0x8] sm:$0xf]
    %v751 = vld [vmem:[#allocation12 + $0xc] sm:$0xf]
    %v752 = vld [vmem:[#allocation12 + $0x10] sm:$0xf]
    %v753 = vld [vmem:[#allocation12 + $0x14] sm:$0xf]
    %v754 = vld [vmem:[#allocation12 + $0x18] sm:$0xf]
    %v755 = vld [vmem:[#allocation12 + $0x1c] sm:$0xf]
    %v756 = vld [vmem:[#allocation12 + $0x20] sm:$0xf]
    %v757 = vld [vmem:[#allocation12 + $0x24] sm:$0xf]
    %v758 = vld [vmem:[#allocation12 + $0x28] sm:$0xf]
    %v759 = vld [vmem:[#allocation12 + $0x2c] sm:$0xf]
    %v760 = vld [vmem:[#allocation12 + $0x30] sm:$0xf]
    %v761 = vld [vmem:[#allocation12 + $0x34] sm:$0xf]
    %v762 = vld [vmem:[#allocation12 + $0x38] sm:$0xf]
    %v763 = vld [vmem:[#allocation12 + $0x3c] sm:$0xf]
    %v764 = vld [vmem:[%s9] sm:$0x1]
    %v766 = vlaneseq
    %v767 = vshrl.u32 %v766, 7
    %v768 = vsub.s32 0, %v767
    %v769 = vrot.slane %v764, %v768
    %v787 = vunpack.c.l.b16 %v748
    %v788 = vunpack.c.l.b16 %v749
    %v789 = vunpack.c.l.b16 %v750
    %v790 = vunpack.c.l.b16 %v751
    %v791 = vunpack.c.l.b16 %v752
    %v792 = vunpack.c.l.b16 %v753
    %v793 = vunpack.c.l.b16 %v754
    %v794 = vunpack.c.l.b16 %v755
    %v795 = vunpack.c.l.b16 %v756
    %v796 = vunpack.c.l.b16 %v757
    %v797 = vunpack.c.l.b16 %v758
    %v798 = vunpack.c.l.b16 %v759
    %v799 = vunpack.c.l.b16 %v760
    %v800 = vunpack.c.l.b16 %v761
    %v801 = vunpack.c.l.b16 %v762
    %v802 = vunpack.c.l.b16 %v763
    %v803 = vpack.c.b16 %v788, %v787
    %v804 = vpack.c.b16 %v790, %v789
    %v805 = vpack.c.b16 %v792, %v791
    %v806 = vpack.c.b16 %v794, %v793
    %v807 = vpack.c.b16 %v796, %v795
    %v808 = vpack.c.b16 %v798, %v797
    %v809 = vpack.c.b16 %v800, %v799
    %v810 = vpack.c.b16 %v802, %v801
    %819 = vmatprep.subr.bf16.mxu0 0
    %820 = vmatpush1.bf16.msra.mxu0 %v803
    %821 = vmatprep.subr.bf16.mxu0 0
    %822 = vmatpush1.bf16.msra.mxu0 %v804
    %823 = vmatprep.subr.bf16.mxu0 0
    %824 = vmatpush1.bf16.msra.mxu0 %v805
    %825 = vmatprep.subr.bf16.mxu0 0
    %826 = vmatpush1.bf16.msra.mxu0 %v806
    %827 = vmatprep.subr.bf16.mxu0 0
    %828 = vmatpush1.bf16.msra.mxu0 %v807
    %829 = vmatprep.subr.bf16.mxu0 0
    %830 = vmatpush1.bf16.msra.mxu0 %v808
    %831 = vmatprep.subr.bf16.mxu0 0
    %832 = vmatpush1.bf16.msra.mxu0 %v809
    %833 = vmatprep.subr.bf16.mxu0 0
    %834 = vmatpush1.bf16.msra.mxu0 %v810
    %835 = vmatprep.subr.bf16.mxu0 0
    %836 = vmatpush1.bf16.msra.mxu0 0
    %837 = vmatprep.subr.bf16.mxu0 0
    %838 = vmatpush1.bf16.msra.mxu0 0
    %839 = vmatprep.subr.bf16.mxu0 0
    %840 = vmatpush1.bf16.msra.mxu0 0
    %841 = vmatprep.subr.bf16.mxu0 0
    %842 = vmatpush1.bf16.msra.mxu0 0
    %843 = vmatprep.subr.bf16.mxu0 0
    %844 = vmatpush1.bf16.msra.mxu0 0
    %845 = vmatprep.subr.bf16.mxu0 0
    %846 = vmatpush1.bf16.msra.mxu0 0
    %847 = vmatprep.subr.bf16.mxu0 0
    %848 = vmatpush1.bf16.msra.mxu0 0
    %849 = vmatprep.subr.bf16.mxu0 0
    %850 = vmatpush1.bf16.msra.mxu0 0
    %851 = vmatprep.mubr.bf16.mxu0 0
    %852 = vmatmul.mubr.bf16.gmra.mrb[0].mxu0 %v747
    %v853 = vpop.f32.mrb[0].mxu0
    %v854 = vadd.f32 %v769, %v853
    %v855 = vpop.f32.mrb[0].mxu0
    %v856 = vpop.f32.mrb[0].mxu0
    %v857 = vpop.f32.mrb[0].mxu0
    %858 = vdwg.mxu0
    %v859 = vmax.f32 %v854, 0.0
    %v860 = vadd.f32 %v859, %v633
    %v861 = vld [vmem:[%s10] sm:$0x1]
    %v863 = vlaneseq
    %v864 = vshrl.u32 %v863, 7
    %v865 = vsub.s32 0, %v864
    %v866 = vrot.slane %v861, %v865
    %v868 = vmul.f32 %v860, %v866
    %869 = vadd.xlane.f32.xlu0 %v868
    %v870 = vpop.xlane.xlu0 %869
    %v871 = vld [vmem:[#allocation4] sm:$0x1]
    %v873 = vlaneseq
    %v874 = vshrl.u32 %v873, 7
    %v875 = vsub.s32 0, %v874
    %v876 = vrot.slane %v871, %v875
    %v878 = vadd.f32 %v870, %v876
    %vm879 = vcmask 7168
    %880 = vst.msk [vmem:[%s12] sm:$0xff] %vm879, %v878
    // Predicated region
    $region66: #{tpu_custom_call.1} parent=1 // pred_check
      _
    $region67: #{tpu_custom_call.1} parent=1 // pred_check_branch
      %882 = sbr.rel (0) target = $region69
    $region68: #{tpu_custom_call.1} parent=1 // pred_region
      _
    $region69: #{tpu_custom_call.1} parent=1 // pred_fallthru
      _
    // Predicated region
    $region70: #{tpu_custom_call.1} parent=1 // pred_check
      _
    $region71: #{tpu_custom_call.1} parent=1 // pred_check_branch
      %884 = sbr.rel (0) target = $region73
    $region72: #{tpu_custom_call.1} parent=1 // pred_region
      _
    $region73: #{tpu_custom_call.1} parent=1 // pred_fallthru
      _
    %885 = vsyncpa [#allocation6], 1
    %886 = vsyncpa [#allocation8], 1
    %887 = vsyncpa [#allocation11], 1

</llo_original>
